<compile_context>
chip_gen: v6e
topology: v6e:2x2x1
jax: 0.10.0
libtpu: 0.0.40
codegen_flags: <defaults>
</compile_context>

<pallas_src>
import jax
import jax.numpy as jnp
from jax.experimental import pallas as pl
from jax.experimental.pallas import tpu as pltpu


def seq_attention_kernel(x_ref, wt_ref, b_ref, out_ref):
    # x_ref : (Bb, T, D) block of batches
    # wt_ref: (D, D)   -- Linear weight already transposed to (in, out)
    # b_ref : (1, D)   -- Linear bias
    # out_ref: (Bb, T)
    Bb, T, D = x_ref.shape
    x = x_ref[...]                                   # (Bb, T, D)
    wt = wt_ref[...]                                 # (D, D)
    bias = b_ref[...]                                # (1, D)

    # ---- Linear: one fused MXU matmul over all rows of the batch block ----
    # (collapse of leading dims only; T is a multiple of the f32 sublane tile)
    x_flat = x.reshape(Bb * T, D)                                         # (Bb*T, D)
    hid_flat = jnp.dot(x_flat, wt, preferred_element_type=jnp.float32) + bias
    hid = hid_flat.reshape(Bb, T, D)                                      # (Bb, T, D)

    # ---- e[b] = hid[b]^T @ hid[b] : batched matmul contracting T, no .T ----
    e = jnp.einsum("btd,bte->bde", hid, hid,
                   preferred_element_type=jnp.float32)                    # (Bb, D, D)

    # ---- softmax over dim=1 of (B, D, D) (the 'd' axis) ----
    e_max = jnp.max(e, axis=1, keepdims=True)                             # (Bb, 1, D)
    p = jnp.exp(e - e_max)                                                # (Bb, D, D)
    denom = jnp.sum(p, axis=1, keepdims=True)                             # (Bb, 1, D)
    alpha = p * pl.reciprocal(denom, approx=False)                        # (Bb, D, D)

    # ---- fused epilogue: sum_d(alpha @ x^T) == (colsum alpha) . x^T ----
    s = jnp.sum(alpha, axis=1)                                            # (Bb, D)
    out = jnp.sum(x * s[:, None, :], axis=-1)                             # (Bb, T)
    out_ref[...] = out.astype(out_ref.dtype)


def seq_attention(x, weight, bias, *, batch_block=None):
    """x: (B, T, D); weight: (D, D) PyTorch-style (out, in); bias: (D,)."""
    B, T, D = x.shape
    if batch_block is None:
        batch_block = B            # toy sizes: whole problem in a single grid step
    assert B % batch_block == 0, "batch_block must divide B"
    assert T % 8 == 0, "T must be a multiple of the f32 sublane tile (8)"

    wt = weight.T                  # (in, out) so kernel does x @ wt
    bias2d = bias.reshape(1, D)
    grid = (B // batch_block,)

    return pl.pallas_call(
        seq_attention_kernel,
        out_shape=jax.ShapeDtypeStruct((B, T), jnp.float32),
        grid_spec=pltpu.PrefetchScalarGridSpec(
            num_scalar_prefetch=0,
            grid=grid,
            in_specs=[
                pl.BlockSpec((batch_block, T, D), lambda b: (b, 0, 0)),
                pl.BlockSpec((D, D), lambda b: (0, 0)),
                pl.BlockSpec((1, D), lambda b: (0, 0)),
            ],
            out_specs=pl.BlockSpec((batch_block, T), lambda b: (b, 0)),
        ),
        compiler_params=pltpu.CompilerParams(
            dimension_semantics=("parallel",)),
    )(x, wt, bias2d)


def seq_attention_ref(x, weight, bias):
    """Pure-JAX reference mirroring the PyTorch forward exactly."""
    hid = jnp.einsum("btd,od->bto", x, weight) + bias          # (B, T, D)
    e = jnp.einsum("btd,bte->bde", hid, hid)                   # (B, D, D)
    alpha = jax.nn.softmax(e, axis=1)                          # softmax over dim=1
    m = jnp.einsum("bde,bte->bdt", alpha, x)                   # alpha @ x^T
    return jnp.sum(m, axis=1)                                  # (B, T)


if __name__ == "__main__":
    B, T, D = 2, 8, 32      # batch=2, seq=8, hidden(input_dim)=32

    key = jax.random.PRNGKey(0)
    kx, kw, kb = jax.random.split(key, 3)

    x = jax.random.normal(kx, (B, T, D), dtype=jnp.float32)

    # Deterministic PyTorch-Linear-style init: U(-1/sqrt(D), 1/sqrt(D))
    bound = 1.0 / (D ** 0.5)
    weight = jax.random.uniform(kw, (D, D), minval=-bound, maxval=bound,
                                dtype=jnp.float32)
    bias = jax.random.uniform(kb, (D,), minval=-bound, maxval=bound,
                              dtype=jnp.float32)

    out = seq_attention(x, weight, bias)
    out = jax.block_until_ready(out)

    ref = seq_attention_ref(x, weight, bias)
    assert out.shape == (B, T)
    assert jnp.allclose(out, ref, atol=1e-4, rtol=1e-4), (out, ref)

    print("KERNEL_OK")
</pallas_src>

<mosaic_0001>
module attributes {stable_mosaic.version = 11 : i64} {
  func.func @seq_attention_kernel(%arg0: i32, %arg1: memref<2x8x32xf32, #tpu.memory_space<vmem>>, %arg2: memref<32x32xf32, #tpu.memory_space<vmem>>, %arg3: memref<1x32xf32, #tpu.memory_space<vmem>>, %arg4: memref<2x8xf32, #tpu.memory_space<vmem>>) attributes {dimension_semantics = [#tpu.dimension_semantics<parallel>], iteration_bounds = array<i64: 1>, scalar_prefetch = 0 : i64, scratch_operands = 0 : i64, tpu.core_type = #tpu.core_type<tc>, window_params = [{transform_indices = @transform_0, window_bounds = array<i64: 2, 8, 32>}, {pipeline_mode = #tpu.pipeline_mode<synchronous>, transform_indices = @transform_1, window_bounds = array<i64: 32, 32>}, {pipeline_mode = #tpu.pipeline_mode<synchronous>, transform_indices = @transform_2, window_bounds = array<i64: 1, 32>}, {transform_indices = @transform_3, window_bounds = array<i64: 2, 8>}]} {
    %c0 = arith.constant 0 : index
    %c0_0 = arith.constant 0 : index
    %c0_1 = arith.constant 0 : index
    %0 = vector.load %arg1[%c0, %c0_0, %c0_1] : memref<2x8x32xf32, #tpu.memory_space<vmem>>, vector<2x8x32xf32>
    %c0_2 = arith.constant 0 : index
    %c0_3 = arith.constant 0 : index
    %1 = vector.load %arg2[%c0_2, %c0_3] : memref<32x32xf32, #tpu.memory_space<vmem>>, vector<32x32xf32>
    %c0_4 = arith.constant 0 : index
    %c0_5 = arith.constant 0 : index
    %2 = vector.load %arg3[%c0_4, %c0_5] : memref<1x32xf32, #tpu.memory_space<vmem>>, vector<1x32xf32>
    %3 = vector.shape_cast %0 : vector<2x8x32xf32> to vector<16x32xf32>
    %cst = arith.constant dense<0.000000e+00> : vector<16x32xf32>
    %4 = tpu.matmul %3, %1, %cst {dimension_numbers = #tpu.dot_dimension_numbers<[1], [0], [0], [1], [0, 0, 1, 1], [], []>} : vector<16x32xf32>, vector<32x32xf32>, vector<16x32xf32> -> vector<16x32xf32>
    %5 = vector.broadcast %2 : vector<1x32xf32> to vector<16x32xf32>
    %6 = arith.addf %4, %5 : vector<16x32xf32>
    %7 = vector.shape_cast %6 : vector<16x32xf32> to vector<2x8x32xf32>
    "tpu.trace_start"() <{level = 10 : i32, message = "btd,bte->bde"}> : () -> ()
    %cst_6 = arith.constant dense<0.000000e+00> : vector<2x32x32xf32>
    %8 = tpu.matmul %7, %7, %cst_6 {dimension_numbers = #tpu.dot_dimension_numbers<[1], [1], [2], [2], [0, 0, 0, 2, 1, 2], [0], [0]>} : vector<2x8x32xf32>, vector<2x8x32xf32>, vector<2x32x32xf32> -> vector<2x32x32xf32>
    "tpu.trace_stop"() : () -> ()
    %cst_7 = arith.constant dense<0xFF800000> : vector<2x32xf32>
    %9 = vector.multi_reduction <maximumf>, %8, %cst_7 [1] : vector<2x32x32xf32> to vector<2x32xf32>
    %10 = vector.shape_cast %9 : vector<2x32xf32> to vector<2x1x32xf32>
    %11 = vector.broadcast %10 : vector<2x1x32xf32> to vector<2x32x32xf32>
    %12 = arith.subf %8, %11 : vector<2x32x32xf32>
    %13 = math.exp %12 : vector<2x32x32xf32>
    %cst_8 = arith.constant dense<0.000000e+00> : vector<2x32xf32>
    %14 = vector.multi_reduction <add>, %13, %cst_8 [1] : vector<2x32x32xf32> to vector<2x32xf32>
    %15 = vector.shape_cast %14 : vector<2x32xf32> to vector<2x1x32xf32>
    %16 = tpu.reciprocal %15 : vector<2x1x32xf32> -> vector<2x1x32xf32>
    %17 = vector.broadcast %16 : vector<2x1x32xf32> to vector<2x32x32xf32>
    %18 = arith.mulf %13, %17 : vector<2x32x32xf32>
    %cst_9 = arith.constant dense<0.000000e+00> : vector<2x32xf32>
    %19 = vector.multi_reduction <add>, %18, %cst_9 [1] : vector<2x32x32xf32> to vector<2x32xf32>
    %20 = vector.shape_cast %19 : vector<2x32xf32> to vector<2x1x32xf32>
    %21 = vector.broadcast %20 : vector<2x1x32xf32> to vector<2x8x32xf32>
    %22 = arith.mulf %0, %21 : vector<2x8x32xf32>
    %cst_10 = arith.constant dense<0.000000e+00> : vector<2x8xf32>
    %23 = vector.multi_reduction <add>, %22, %cst_10 [2] : vector<2x8x32xf32> to vector<2x8xf32>
    %c0_11 = arith.constant 0 : index
    %c0_12 = arith.constant 0 : index
    %24 = vector.load %arg4[%c0_11, %c0_12] : memref<2x8xf32, #tpu.memory_space<vmem>>, vector<2x8xf32>
    tpu.vector_store %arg4[%c0_11, %c0_12], %23 {strides = array<i32>} : memref<2x8xf32, #tpu.memory_space<vmem>>, vector<2x8xf32>,
    return
  }
  func.func @transform_0(%arg0: i32) -> (i32, i32, i32) {
    %c0_i32 = arith.constant 0 : i32
    %c0_i32_0 = arith.constant 0 : i32
    %c0_i32_1 = arith.constant 0 : i32
    return %arg0, %c0_i32, %c0_i32_0 : i32, i32, i32
  }
  func.func @transform_1(%arg0: i32) -> (i32, i32) {
    %c0_i32 = arith.constant 0 : i32
    %c0_i32_0 = arith.constant 0 : i32
    %c0_i32_1 = arith.constant 0 : i32
    return %c0_i32, %c0_i32_0 : i32, i32
  }
  func.func @transform_2(%arg0: i32) -> (i32, i32) {
    %c0_i32 = arith.constant 0 : i32
    %c0_i32_0 = arith.constant 0 : i32
    %c0_i32_1 = arith.constant 0 : i32
    return %c0_i32, %c0_i32_0 : i32, i32
  }
  func.func @transform_3(%arg0: i32) -> (i32, i32) {
    %c0_i32 = arith.constant 0 : i32
    %c0_i32_0 = arith.constant 0 : i32
    return %arg0, %c0_i32 : i32, i32
  }
}

</mosaic_0001>

<llo_original>
// kernel: tpu_custom_call.1
$region0: #{tpu_custom_call.1}
  #allocation0 [shape = 'u32[]', space=smem, size = 0x4, offset = 0x4, fixed_abs, tag = 'smem constant byte address 0x4 - core index']
  #allocation1 [shape = 'u32[144,128]{1,0:T(1,128)}', space=vmem, size = 0x12000, scoped, tag = 'internal scratch']
  %s0 = inlined_call_operand.hbm [shape: f32[2,8,32], index: 0, kind: input, shape index: {}]
  %s1 = inlined_call_operand.hbm [shape: f32[32,32], index: 1, kind: input, shape index: {}]
  %s2 = inlined_call_operand.vmem [shape: f32[1,32], index: 2, kind: input, shape index: {}]
  %s3 = inlined_call_operand.hbm [shape: f32[2,8], index: 3, kind: output, shape index: {}]
  %s4 = sld [smem:[#allocation0]]
  $region30: #{tpu_custom_call.1} parent=0
    _
  %s6 = ssub.s32 1, %s4
  %s7 = scalar_select 0, %s6, %s4
  $region1: #{tpu_custom_call.1} parent=0
    #allocation2 [shape = 'u8[8192]{0}', space=vmem, size = 0x2000, scoped, tag = 'input window, operand 0, single buffered']
    #allocation3 [shape = 's32[1]{0}', space=sflag, size = 0x4, scoped, tag = 'scoped memory for tpu_custom_call.1']
    #allocation4 [shape = 's32[1]{0}', space=sflag, size = 0x4, scoped, tag = 'scoped memory for tpu_custom_call.1']
    #allocation5 [shape = 'u8[16384]{0}', space=vmem, size = 0x4000, scoped, tag = 'input window, operand 1, single buffered']
    #allocation6 [shape = 's32[1]{0}', space=sflag, size = 0x4, scoped, tag = 'scoped memory for tpu_custom_call.1']
    #allocation7 [shape = 'u8[1024]{0}', space=vmem, size = 0x400, scoped, tag = 'output window, operand 0, single buffered']
    %8 = vsyncpa [#allocation3], 0
    %9 = vsyncpa [#allocation6], 0
    %10 = vsyncpa [#allocation4], 0
    // Predicated region
    $region2: #{tpu_custom_call.1} parent=1 // pred_check
      _
    $region3: #{tpu_custom_call.1} parent=1 // pred_check_branch
      %12 = sbr.rel (0) target = $region5
    $region4: #{tpu_custom_call.1} parent=1 // pred_region
      %s14 = ssub.s32 256, 256
      %15 = vsyncadd [#allocation3], %s14
      %s16 = sshll.u32 [#allocation2], 4
      %s17 = int_to_ptr.vmem [resolvable:$true] %s16
      %22 = dma.hbm_to_vmem [thread:$0]  %s0, 256, %s17, [#allocation3], 128, 128, 8
    $region5: #{tpu_custom_call.1} parent=1 // pred_fallthru
      _
    // Predicated region
    $region6: #{tpu_custom_call.1} parent=1 // pred_check
      _
    $region7: #{tpu_custom_call.1} parent=1 // pred_check_branch
      %24 = sbr.rel (0) target = $region9
    $region8: #{tpu_custom_call.1} parent=1 // pred_region
      %s26 = ssub.s32 512, 512
      %27 = vsyncadd [#allocation6], %s26
      %s28 = sshll.u32 [#allocation5], 4
      %s29 = int_to_ptr.vmem [resolvable:$true] %s28
      %34 = dma.hbm_to_vmem [thread:$0]  %s1, 512, %s29, [#allocation6], 128, 128, 8
    $region9: #{tpu_custom_call.1} parent=1 // pred_fallthru
      _
    // Predicated region
    $region10: #{tpu_custom_call.1} parent=1 // pred_check
      _
    $region11: #{tpu_custom_call.1} parent=1 // pred_check_branch
      %36 = sbr.rel (0) target = $region13
    $region12: #{tpu_custom_call.1} parent=1 // pred_region
      _
    $region13: #{tpu_custom_call.1} parent=1 // pred_fallthru
      _
    // Predicated region
    $region14: #{tpu_custom_call.1} parent=1 // pred_check
      _
    $region15: #{tpu_custom_call.1} parent=1 // pred_check_branch
      %38 = sbr.rel (0) target = $region17
    $region16: #{tpu_custom_call.1} parent=1 // pred_region
      %39 = dma.done [#allocation3], 256
    $region17: #{tpu_custom_call.1} parent=1 // pred_fallthru
      _
    // Predicated region
    $region18: #{tpu_custom_call.1} parent=1 // pred_check
      _
    $region19: #{tpu_custom_call.1} parent=1 // pred_check_branch
      %41 = sbr.rel (0) target = $region21
    $region20: #{tpu_custom_call.1} parent=1 // pred_region
      %42 = dma.done [#allocation6], 512
    $region21: #{tpu_custom_call.1} parent=1 // pred_fallthru
      _
    %v43 = vld [vmem:[#allocation2] sm:$0xff]
    %v44 = vld [vmem:[#allocation2 + $0x8] sm:$0xff]
    %v45 = vld [vmem:[#allocation5] sm:$0xff]
    %v46 = vld [vmem:[#allocation5 + $0x8] sm:$0xff]
    %v47 = vld [vmem:[#allocation5 + $0x10] sm:$0xff]
    %v48 = vld [vmem:[#allocation5 + $0x18] sm:$0xff]
    %v49 = vld [vmem:[%s2] sm:$0x1]
    %v51 = vlaneseq
    %v52 = vshrl.u32 %v51, 7
    %v53 = vsub.s32 0, %v52
    %v54 = vrot.slane %v49, %v53
    %vm56 = vcmask 261120
    %v58 = vsel %vm56, %v43, 0
    %v61 = vsel %vm56, %v44, 0
    %63 = vmatprep.subr.mxu0 0.0
    %64 = vmatpush1.msra.mxu0 0.0
    %65 = vmatprep.subr.mxu0 0.0
    %66 = vmatpush1.msra.mxu0 0.0
    %67 = vmatprep.subr.mxu0 0.0
    %68 = vmatpush1.msra.mxu0 0.0
    %69 = vmatprep.subr.mxu0 0.0
    %70 = vmatpush1.msra.mxu0 0.0
    %71 = vmatprep.subr.mxu0 0.0
    %72 = vmatpush1.msra.mxu0 0.0
    %73 = vmatprep.subr.mxu0 0.0
    %74 = vmatpush1.msra.mxu0 0.0
    %75 = vmatprep.subr.mxu0 0.0
    %76 = vmatpush1.msra.mxu0 0.0
    %77 = vmatprep.subr.mxu0 0.0
    %78 = vmatpush1.msra.mxu0 0.0
    %79 = vmatprep.subr.mxu0 0.0
    %80 = vmatpush1.msra.mxu0 0.0
    %81 = vmatprep.subr.mxu0 0.0
    %82 = vmatpush1.msra.mxu0 0.0
    %83 = vmatprep.subr.mxu0 0.0
    %84 = vmatpush1.msra.mxu0 0.0
    %85 = vmatprep.subr.mxu0 0.0
    %86 = vmatpush1.msra.mxu0 0.0
    %87 = vmatprep.subr.mxu0 0.0
    %88 = vmatpush1.msra.mxu0 %v48
    %89 = vmatprep.subr.mxu0 0.0
    %90 = vmatpush1.msra.mxu0 %v47
    %91 = vmatprep.subr.mxu0 0.0
    %92 = vmatpush1.msra.mxu0 %v46
    %93 = vmatprep.subr.mxu0 0.0
    %94 = vmatpush1.msra.mxu0 %v45
    %95 = vmatprep.subr.mxu0 0.0
    %96 = vmatpush2.msra.mxu0 0.0
    %97 = vmatprep.subr.mxu0 0.0
    %98 = vmatpush2.msra.mxu0 0.0
    %99 = vmatprep.subr.mxu0 0.0
    %100 = vmatpush2.msra.mxu0 0.0
    %101 = vmatprep.subr.mxu0 0.0
    %102 = vmatpush2.msra.mxu0 0.0
    %103 = vmatprep.subr.mxu0 0.0
    %104 = vmatpush2.msra.mxu0 0.0
    %105 = vmatprep.subr.mxu0 0.0
    %106 = vmatpush2.msra.mxu0 0.0
    %107 = vmatprep.subr.mxu0 0.0
    %108 = vmatpush2.msra.mxu0 0.0
    %109 = vmatprep.subr.mxu0 0.0
    %110 = vmatpush2.msra.mxu0 0.0
    %111 = vmatprep.subr.mxu0 0.0
    %112 = vmatpush2.msra.mxu0 0.0
    %113 = vmatprep.subr.mxu0 0.0
    %114 = vmatpush2.msra.mxu0 0.0
    %115 = vmatprep.subr.mxu0 0.0
    %116 = vmatpush2.msra.mxu0 0.0
    %117 = vmatprep.subr.mxu0 0.0
    %118 = vmatpush2.msra.mxu0 0.0
    %119 = vmatprep.subr.mxu0 0.0
    %120 = vmatpush2.msra.mxu0 0.0
    %121 = vmatprep.subr.mxu0 0.0
    %122 = vmatpush2.msra.mxu0 0.0
    %123 = vmatprep.subr.mxu0 0.0
    %124 = vmatpush2.msra.mxu0 0.0
    %125 = vmatprep.subr.mxu0 0.0
    %126 = vmatpush2.msra.mxu0 0.0
    %127 = vmatprep.mubr.f32.mxu0 0.0
    %128 = vmatmul.mubr.f32.gmra.mxu0 %v58
    %v129 = vpop.f32.mrf.mxu0
    %v130 = vadd.f32 %v54, %v129
    %v131 = vpop.f32.mrf.mxu0
    %132 = vmatprep.mubr.f32.mxu0 0.0
    %133 = vmatmul.mubr.f32.gmra.mxu0 %v61
    %v134 = vpop.f32.mrf.mxu0
    %v135 = vadd.f32 %v54, %v134
    %v136 = vpop.f32.mrf.mxu0
    %137 = vdwg.mxu0
    %138 = vxpose.xlu0.b32.start [1/16] %v130, 128
    %139 = vxpose.xlu0.b32.cont [2/16] 0.0, 128
    %140 = vxpose.xlu0.b32.cont [3/16] 0.0, 128
    %141 = vxpose.xlu0.b32.cont [4/16] 0.0, 128
    %142 = vxpose.xlu0.b32.cont [5/16] 0.0, 128
    %143 = vxpose.xlu0.b32.cont [6/16] 0.0, 128
    %144 = vxpose.xlu0.b32.cont [7/16] 0.0, 128
    %145 = vxpose.xlu0.b32.cont [8/16] 0.0, 128
    %146 = vxpose.xlu0.b32.cont [9/16] 0.0, 128
    %147 = vxpose.xlu0.b32.cont [10/16] 0.0, 128
    %148 = vxpose.xlu0.b32.cont [11/16] 0.0, 128
    %149 = vxpose.xlu0.b32.cont [12/16] 0.0, 128
    %150 = vxpose.xlu0.b32.cont [13/16] 0.0, 128
    %151 = vxpose.xlu0.b32.cont [14/16] 0.0, 128
    %152 = vxpose.xlu0.b32.cont [15/16] 0.0, 128
    %153 = vxpose.xlu0.b32.end [16/16] 0.0, 128
    %v154 = vpop.trf.xlu0
    %v155 = vpop.trf.xlu0
    %v156 = vpop.trf.xlu0
    %v157 = vpop.trf.xlu0
    %v158 = vpop.trf.xlu0
    %v159 = vpop.trf.xlu0
    %v160 = vpop.trf.xlu0
    %v161 = vpop.trf.xlu0
    %v162 = vpop.trf.xlu0
    %v163 = vpop.trf.xlu0
    %v164 = vpop.trf.xlu0
    %v165 = vpop.trf.xlu0
    %v166 = vpop.trf.xlu0
    %v167 = vpop.trf.xlu0
    %v168 = vpop.trf.xlu0
    %v169 = vpop.trf.xlu0
    %vm170 = vcmask 64512
    %v172 = vsel %vm170, %v154, 0
    %v175 = vsel %vm170, %v155, 0
    %v178 = vsel %vm170, %v156, 0
    %v181 = vsel %vm170, %v157, 0
    %183 = vmatprep.subr.mxu0 0.0
    %184 = vmatpush1.msra.mxu0 0.0
    %185 = vmatprep.subr.mxu0 0.0
    %186 = vmatpush1.msra.mxu0 0.0
    %187 = vmatprep.subr.mxu0 0.0
    %188 = vmatpush1.msra.mxu0 0.0
    %189 = vmatprep.subr.mxu0 0.0
    %190 = vmatpush1.msra.mxu0 0.0
    %191 = vmatprep.subr.mxu0 0.0
    %192 = vmatpush1.msra.mxu0 0.0
    %193 = vmatprep.subr.mxu0 0.0
    %194 = vmatpush1.msra.mxu0 0.0
    %195 = vmatprep.subr.mxu0 0.0
    %196 = vmatpush1.msra.mxu0 0.0
    %197 = vmatprep.subr.mxu0 0.0
    %198 = vmatpush1.msra.mxu0 0.0
    %199 = vmatprep.subr.mxu0 0.0
    %200 = vmatpush1.msra.mxu0 0.0
    %201 = vmatprep.subr.mxu0 0.0
    %202 = vmatpush1.msra.mxu0 0.0
    %203 = vmatprep.subr.mxu0 0.0
    %204 = vmatpush1.msra.mxu0 0.0
    %205 = vmatprep.subr.mxu0 0.0
    %206 = vmatpush1.msra.mxu0 0.0
    %207 = vmatprep.subr.mxu0 0.0
    %208 = vmatpush1.msra.mxu0 0.0
    %209 = vmatprep.subr.mxu0 0.0
    %210 = vmatpush1.msra.mxu0 0.0
    %211 = vmatprep.subr.mxu0 0.0
    %212 = vmatpush1.msra.mxu0 0.0
    %213 = vmatprep.subr.mxu0 0.0
    %214 = vmatpush1.msra.mxu0 %v130
    %215 = vmatprep.subr.mxu0 0.0
    %216 = vmatpush2.msra.mxu0 0.0
    %217 = vmatprep.subr.mxu0 0.0
    %218 = vmatpush2.msra.mxu0 0.0
    %219 = vmatprep.subr.mxu0 0.0
    %220 = vmatpush2.msra.mxu0 0.0
    %221 = vmatprep.subr.mxu0 0.0
    %222 = vmatpush2.msra.mxu0 0.0
    %223 = vmatprep.subr.mxu0 0.0
    %224 = vmatpush2.msra.mxu0 0.0
    %225 = vmatprep.subr.mxu0 0.0
    %226 = vmatpush2.msra.mxu0 0.0
    %227 = vmatprep.subr.mxu0 0.0
    %228 = vmatpush2.msra.mxu0 0.0
    %229 = vmatprep.subr.mxu0 0.0
    %230 = vmatpush2.msra.mxu0 0.0
    %231 = vmatprep.subr.mxu0 0.0
    %232 = vmatpush2.msra.mxu0 0.0
    %233 = vmatprep.subr.mxu0 0.0
    %234 = vmatpush2.msra.mxu0 0.0
    %235 = vmatprep.subr.mxu0 0.0
    %236 = vmatpush2.msra.mxu0 0.0
    %237 = vmatprep.subr.mxu0 0.0
    %238 = vmatpush2.msra.mxu0 0.0
    %239 = vmatprep.subr.mxu0 0.0
    %240 = vmatpush2.msra.mxu0 0.0
    %241 = vmatprep.subr.mxu0 0.0
    %242 = vmatpush2.msra.mxu0 0.0
    %243 = vmatprep.subr.mxu0 0.0
    %244 = vmatpush2.msra.mxu0 0.0
    %245 = vmatprep.subr.mxu0 0.0
    %246 = vmatpush2.msra.mxu0 0.0
    %247 = vmatprep.mubr.f32.mxu0 0.0
    %248 = vmatmul.mubr.f32.gmra.mxu0 %v172
    %v249 = vpop.f32.mrf.mxu0
    %v250 = vadd.f32 0.0, %v249
    %v251 = vpop.f32.mrf.mxu0
    %252 = vmatprep.mubr.f32.mxu0 0.0
    %253 = vmatmul.mubr.f32.gmra.mxu0 %v175
    %v254 = vpop.f32.mrf.mxu0
    %v255 = vadd.f32 0.0, %v254
    %v256 = vpop.f32.mrf.mxu0
    %257 = vmatprep.mubr.f32.mxu0 0.0
    %258 = vmatmul.mubr.f32.gmra.mxu0 %v178
    %v259 = vpop.f32.mrf.mxu0
    %v260 = vadd.f32 0.0, %v259
    %v261 = vpop.f32.mrf.mxu0
    %262 = vmatprep.mubr.f32.mxu0 0.0
    %263 = vmatmul.mubr.f32.gmra.mxu0 %v181
    %v264 = vpop.f32.mrf.mxu0
    %v265 = vadd.f32 0.0, %v264
    %v266 = vpop.f32.mrf.mxu0
    %267 = vdwg.mxu0
    %268 = vxpose.xlu0.b32.start [1/16] %v135, 128
    %269 = vxpose.xlu0.b32.cont [2/16] 0.0, 128
    %270 = vxpose.xlu0.b32.cont [3/16] 0.0, 128
    %271 = vxpose.xlu0.b32.cont [4/16] 0.0, 128
    %272 = vxpose.xlu0.b32.cont [5/16] 0.0, 128
    %273 = vxpose.xlu0.b32.cont [6/16] 0.0, 128
    %274 = vxpose.xlu0.b32.cont [7/16] 0.0, 128
    %275 = vxpose.xlu0.b32.cont [8/16] 0.0, 128
    %276 = vxpose.xlu0.b32.cont [9/16] 0.0, 128
    %277 = vxpose.xlu0.b32.cont [10/16] 0.0, 128
    %278 = vxpose.xlu0.b32.cont [11/16] 0.0, 128
    %279 = vxpose.xlu0.b32.cont [12/16] 0.0, 128
    %280 = vxpose.xlu0.b32.cont [13/16] 0.0, 128
    %281 = vxpose.xlu0.b32.cont [14/16] 0.0, 128
    %282 = vxpose.xlu0.b32.cont [15/16] 0.0, 128
    %283 = vxpose.xlu0.b32.end [16/16] 0.0, 128
    %v284 = vpop.trf.xlu0
    %v285 = vpop.trf.xlu0
    %v286 = vpop.trf.xlu0
    %v287 = vpop.trf.xlu0
    %v288 = vpop.trf.xlu0
    %v289 = vpop.trf.xlu0
    %v290 = vpop.trf.xlu0
    %v291 = vpop.trf.xlu0
    %v292 = vpop.trf.xlu0
    %v293 = vpop.trf.xlu0
    %v294 = vpop.trf.xlu0
    %v295 = vpop.trf.xlu0
    %v296 = vpop.trf.xlu0
    %v297 = vpop.trf.xlu0
    %v298 = vpop.trf.xlu0
    %v299 = vpop.trf.xlu0
    %v301 = vsel %vm170, %v284, 0
    %v304 = vsel %vm170, %v285, 0
    %v307 = vsel %vm170, %v286, 0
    %v310 = vsel %vm170, %v287, 0
    %312 = vmatprep.subr.mxu0 0.0
    %313 = vmatpush1.msra.mxu0 0.0
    %314 = vmatprep.subr.mxu0 0.0
    %315 = vmatpush1.msra.mxu0 0.0
    %316 = vmatprep.subr.mxu0 0.0
    %317 = vmatpush1.msra.mxu0 0.0
    %318 = vmatprep.subr.mxu0 0.0
    %319 = vmatpush1.msra.mxu0 0.0
    %320 = vmatprep.subr.mxu0 0.0
    %321 = vmatpush1.msra.mxu0 0.0
    %322 = vmatprep.subr.mxu0 0.0
    %323 = vmatpush1.msra.mxu0 0.0
    %324 = vmatprep.subr.mxu0 0.0
    %325 = vmatpush1.msra.mxu0 0.0
    %326 = vmatprep.subr.mxu0 0.0
    %327 = vmatpush1.msra.mxu0 0.0
    %328 = vmatprep.subr.mxu0 0.0
    %329 = vmatpush1.msra.mxu0 0.0
    %330 = vmatprep.subr.mxu0 0.0
    %331 = vmatpush1.msra.mxu0 0.0
    %332 = vmatprep.subr.mxu0 0.0
    %333 = vmatpush1.msra.mxu0 0.0
    %334 = vmatprep.subr.mxu0 0.0
    %335 = vmatpush1.msra.mxu0 0.0
    %336 = vmatprep.subr.mxu0 0.0
    %337 = vmatpush1.msra.mxu0 0.0
    %338 = vmatprep.subr.mxu0 0.0
    %339 = vmatpush1.msra.mxu0 0.0
    %340 = vmatprep.subr.mxu0 0.0
    %341 = vmatpush1.msra.mxu0 0.0
    %342 = vmatprep.subr.mxu0 0.0
    %343 = vmatpush1.msra.mxu0 %v135
    %344 = vmatprep.subr.mxu0 0.0
    %345 = vmatpush2.msra.mxu0 0.0
    %346 = vmatprep.subr.mxu0 0.0
    %347 = vmatpush2.msra.mxu0 0.0
    %348 = vmatprep.subr.mxu0 0.0
    %349 = vmatpush2.msra.mxu0 0.0
    %350 = vmatprep.subr.mxu0 0.0
    %351 = vmatpush2.msra.mxu0 0.0
    %352 = vmatprep.subr.mxu0 0.0
    %353 = vmatpush2.msra.mxu0 0.0
    %354 = vmatprep.subr.mxu0 0.0
    %355 = vmatpush2.msra.mxu0 0.0
    %356 = vmatprep.subr.mxu0 0.0
    %357 = vmatpush2.msra.mxu0 0.0
    %358 = vmatprep.subr.mxu0 0.0
    %359 = vmatpush2.msra.mxu0 0.0
    %360 = vmatprep.subr.mxu0 0.0
    %361 = vmatpush2.msra.mxu0 0.0
    %362 = vmatprep.subr.mxu0 0.0
    %363 = vmatpush2.msra.mxu0 0.0
    %364 = vmatprep.subr.mxu0 0.0
    %365 = vmatpush2.msra.mxu0 0.0
    %366 = vmatprep.subr.mxu0 0.0
    %367 = vmatpush2.msra.mxu0 0.0
    %368 = vmatprep.subr.mxu0 0.0
    %369 = vmatpush2.msra.mxu0 0.0
    %370 = vmatprep.subr.mxu0 0.0
    %371 = vmatpush2.msra.mxu0 0.0
    %372 = vmatprep.subr.mxu0 0.0
    %373 = vmatpush2.msra.mxu0 0.0
    %374 = vmatprep.subr.mxu0 0.0
    %375 = vmatpush2.msra.mxu0 0.0
    %376 = vmatprep.mubr.f32.mxu0 0.0
    %377 = vmatmul.mubr.f32.gmra.mxu0 %v301
    %v378 = vpop.f32.mrf.mxu0
    %v379 = vadd.f32 0.0, %v378
    %v380 = vpop.f32.mrf.mxu0
    %381 = vmatprep.mubr.f32.mxu0 0.0
    %382 = vmatmul.mubr.f32.gmra.mxu0 %v304
    %v383 = vpop.f32.mrf.mxu0
    %v384 = vadd.f32 0.0, %v383
    %v385 = vpop.f32.mrf.mxu0
    %386 = vmatprep.mubr.f32.mxu0 0.0
    %387 = vmatmul.mubr.f32.gmra.mxu0 %v307
    %v388 = vpop.f32.mrf.mxu0
    %v389 = vadd.f32 0.0, %v388
    %v390 = vpop.f32.mrf.mxu0
    %391 = vmatprep.mubr.f32.mxu0 0.0
    %392 = vmatmul.mubr.f32.gmra.mxu0 %v310
    %v393 = vpop.f32.mrf.mxu0
    %v394 = vadd.f32 0.0, %v393
    %v395 = vpop.f32.mrf.mxu0
    %396 = vdwg.mxu0
    %v397 = vsel %vm56, %v250, -inf
    %v398 = vsel %vm56, %v255, -inf
    %v399 = vsel %vm56, %v260, -inf
    %v400 = vmax.f32 %v397, %v399
    %v401 = vsel %vm56, %v265, -inf
    %v402 = vmax.f32 %v398, %v401
    %v403 = vmax.f32 %v400, %v402
    %v404 = vrot.slane %v403, 4
    %v405 = vmax.f32 %v403, %v404
    %v406 = vrot.slane %v405, 2
    %v407 = vmax.f32 %v405, %v406
    %v408 = vrot.slane %v407, 1
    %v409 = vmax.f32 %v407, %v408
    %v410 = vsel %vm56, %v379, -inf
    %v411 = vsel %vm56, %v384, -inf
    %v412 = vsel %vm56, %v389, -inf
    %v413 = vmax.f32 %v410, %v412
    %v414 = vsel %vm56, %v394, -inf
    %v415 = vmax.f32 %v411, %v414
    %v416 = vmax.f32 %v413, %v415
    %v417 = vrot.slane %v416, 4
    %v418 = vmax.f32 %v416, %v417
    %v419 = vrot.slane %v418, 2
    %v420 = vmax.f32 %v418, %v419
    %v421 = vrot.slane %v420, 1
    %v422 = vmax.f32 %v420, %v421
    %v423 = vsub.f32 %v250, %v409
    %v424 = vsub.f32 %v255, %v409
    %v425 = vsub.f32 %v260, %v409
    %v426 = vsub.f32 %v265, %v409
    %v427 = vsub.f32 %v379, %v422
    %v428 = vsub.f32 %v384, %v422
    %v429 = vsub.f32 %v389, %v422
    %v430 = vsub.f32 %v394, %v422
    %v431 = vmul.f32 %v423, 1.442695
    %v432 = vpow.pop %v431
    %v433 = vmul.f32 %v424, 1.442695
    %v434 = vpow.pop %v433
    %v435 = vmul.f32 %v425, 1.442695
    %v436 = vpow.pop %v435
    %v437 = vmul.f32 %v426, 1.442695
    %v438 = vpow.pop %v437
    %v439 = vmul.f32 %v427, 1.442695
    %v440 = vpow.pop %v439
    %v441 = vmul.f32 %v428, 1.442695
    %v442 = vpow.pop %v441
    %v443 = vmul.f32 %v429, 1.442695
    %v444 = vpow.pop %v443
    %v445 = vmul.f32 %v430, 1.442695
    %v446 = vpow.pop %v445
    %v447 = vsel %vm56, %v432, 0.0
    %v448 = vsel %vm56, %v434, 0.0
    %v449 = vadd.f32 %v447, %v448
    %v450 = vsel %vm56, %v436, 0.0
    %v451 = vadd.f32 %v449, %v450
    %v452 = vsel %vm56, %v438, 0.0
    %v453 = vadd.f32 %v451, %v452
    %v454 = vrot.slane %v453, 4
    %v455 = vadd.f32 %v453, %v454
    %v456 = vrot.slane %v455, 2
    %v457 = vadd.f32 %v455, %v456
    %v458 = vrot.slane %v457, 1
    %v459 = vadd.f32 %v457, %v458
    %v460 = vsel %vm56, %v440, 0.0
    %v461 = vsel %vm56, %v442, 0.0
    %v462 = vadd.f32 %v460, %v461
    %v463 = vsel %vm56, %v444, 0.0
    %v464 = vadd.f32 %v462, %v463
    %v465 = vsel %vm56, %v446, 0.0
    %v466 = vadd.f32 %v464, %v465
    %v467 = vrot.slane %v466, 4
    %v468 = vadd.f32 %v466, %v467
    %v469 = vrot.slane %v468, 2
    %v470 = vadd.f32 %v468, %v469
    %v471 = vrot.slane %v470, 1
    %v472 = vadd.f32 %v470, %v471
    %v473 = vrcp.pop %v459
    %v474 = vrcp.pop %v472
    %v475 = vmul.f32 %v432, %v473
    %v476 = vmul.f32 %v434, %v473
    %v477 = vmul.f32 %v436, %v473
    %v478 = vmul.f32 %v438, %v473
    %v479 = vmul.f32 %v440, %v474
    %v480 = vmul.f32 %v442, %v474
    %v481 = vmul.f32 %v444, %v474
    %v482 = vmul.f32 %v446, %v474
    %v483 = vsel %vm56, %v475, 0.0
    %v484 = vsel %vm56, %v476, 0.0
    %v485 = vadd.f32 %v483, %v484
    %v486 = vsel %vm56, %v477, 0.0
    %v487 = vadd.f32 %v485, %v486
    %v488 = vsel %vm56, %v478, 0.0
    %v489 = vadd.f32 %v487, %v488
    %v490 = vrot.slane %v489, 4
    %v491 = vadd.f32 %v489, %v490
    %v492 = vrot.slane %v491, 2
    %v493 = vadd.f32 %v491, %v492
    %v494 = vrot.slane %v493, 1
    %v495 = vadd.f32 %v493, %v494
    %v496 = vsel %vm56, %v479, 0.0
    %v497 = vsel %vm56, %v480, 0.0
    %v498 = vadd.f32 %v496, %v497
    %v499 = vsel %vm56, %v481, 0.0
    %v500 = vadd.f32 %v498, %v499
    %v501 = vsel %vm56, %v482, 0.0
    %v502 = vadd.f32 %v500, %v501
    %v503 = vrot.slane %v502, 4
    %v504 = vadd.f32 %v502, %v503
    %v505 = vrot.slane %v504, 2
    %v506 = vadd.f32 %v504, %v505
    %v507 = vrot.slane %v506, 1
    %v508 = vadd.f32 %v506, %v507
    %v509 = vmul.f32 %v43, %v495
    %v510 = vmul.f32 %v44, %v508
    %v511 = vsel %vm56, %v509, 0.0
    %512 = vadd.xlane.f32.xlu0 %v511
    %v513 = vpop.xlane.xlu0 %512
    %v514 = vsel %vm56, %v510, 0.0
    %515 = vadd.xlane.f32.xlu0 %v514
    %v516 = vpop.xlane.xlu0 %515
    %v519 = vlaneseq
    %v520 = vand.u32 %v519, 127
    %v521 = vlaneseq
    %v522 = vshrl.u32 %v521, 7
    %v523 = vsub.s32 %v520, %v522
    %v524 = vrot.slane %v513, %v523
    %v525 = vlaneseq
    %v526 = vshrl.u32 %v525, 7
    %v527 = vsub.s32 %v520, %v526
    %v528 = vrot.slane %v516, %v527
    %vm529 = vcmask 1041409
    %v530 = vsel %vm529, %v528, %v524
    %vm532 = vcmask 58368
    %533 = vst.msk [vmem:[#allocation7] sm:$0x3] %vm532, %v530
    // Predicated region
    $region22: #{tpu_custom_call.1} parent=1 // pred_check
      _
    $region23: #{tpu_custom_call.1} parent=1 // pred_check_branch
      %535 = sbr.rel (0) target = $region25
    $region24: #{tpu_custom_call.1} parent=1 // pred_region
      %s537 = ssub.s32 32, 32
      %538 = vsyncadd [#allocation4], %s537
      %s540 = sshll.u32 [#allocation7], 4
      %s541 = int_to_ptr.vmem [resolvable:$true] %s540
      %543 = dma.vmem_to_hbm [thread:$0]  %s541, 32, %s3, [#allocation4]
    $region25: #{tpu_custom_call.1} parent=1 // pred_fallthru
      _
    // Predicated region
    $region26: #{tpu_custom_call.1} parent=1 // pred_check
      _
    $region27: #{tpu_custom_call.1} parent=1 // pred_check_branch
      %545 = sbr.rel (0) target = $region29
    $region28: #{tpu_custom_call.1} parent=1 // pred_region
      %546 = dma.done [#allocation4], 32
    $region29: #{tpu_custom_call.1} parent=1 // pred_fallthru
      _
    %547 = vsyncpa [#allocation3], 1
    %548 = vsyncpa [#allocation6], 1
    %549 = vsyncpa [#allocation4], 1

</llo_original>
